<compile_context>
chip_gen: v7x
topology: tpu7x:2x2x1
jax: 0.10.0
libtpu: 0.0.40
codegen_flags: <defaults>
</compile_context>

<pallas_src>
import functools

import jax
import jax.numpy as jnp
from jax import lax
from jax.experimental import pallas as pl
from jax.experimental.pallas import tpu as pltpu


def _round_up(x: int, m: int) -> int:
    return ((x + m - 1) // m) * m


def _label_smooth_ce_kernel(x_ref, tgt_ref, out_ref, *,
                            epsilon: float, num_classes: int,
                            total_b: int, tile_b: int):
    # x_ref:   (TB, K) logits tile, native dtype
    # tgt_ref: (TB, 1) int32 labels tile
    # out_ref: (TB, 1) f32 per-row loss contributions (masked for the ragged tail)
    i = pl.program_id(0)

    x_nat = x_ref[...]                                      # native dtype (TB, K)
    tb, k = x_nat.shape

    # Row max and target-logit select on the native tile (exact for max/select);
    # upcast only the (TB, 1) results.
    m_nat = jnp.max(x_nat, axis=1, keepdims=True)           # (TB, 1)
    class_ids = lax.broadcasted_iota(jnp.int32, (tb, k), 1)
    tgt_sel = jnp.where(class_ids == tgt_ref[...], x_nat, jnp.zeros_like(x_nat))
    tgt_val = jnp.sum(tgt_sel, axis=1, keepdims=True).astype(jnp.float32)  # exact: 1 nonzero/row

    m = m_nat.astype(jnp.float32)                           # (TB, 1)
    shifted = x_nat.astype(jnp.float32) - m                 # (TB, K), <= 0 so exp never overflows
    p = jnp.exp(shifted)                                    # (TB, K)

    if x_nat.dtype == jnp.float32:
        # f32 ingress: HBM-bound on v5e/v6e; keep exact VPU/XLU reductions.
        sum_exp = jnp.sum(p, axis=1, keepdims=True)                          # (TB, 1)
        row_sum = jnp.sum(shifted, axis=1, keepdims=True)                    # (TB, 1)
    else:
        # bf16 ingress: VALU-slot-bound on v6e/v7x -> offload the K-wide
        # reduce-adds to the otherwise-idle MXU with a ones-vector matmul.
        ones_k = jnp.ones((k, 1), jnp.float32)
        sum_exp = jnp.dot(p, ones_k, preferred_element_type=jnp.float32)     # (TB, 1)
        row_sum = jnp.dot(shifted, ones_k, preferred_element_type=jnp.float32)

    lse = jnp.log(sum_exp)                                  # (TB, 1)
    kf = jnp.float32(num_classes)

    # loss_row = -[ (1-eps) * logp[b, t_b] + (eps/K) * sum_k logp[b, k] ]
    per_row = -((1.0 - epsilon) * ((tgt_val - m) - lse)
                + (epsilon / num_classes) * (row_sum - kf * lse))            # (TB, 1)

    # Mask rows past the true batch with a SELECT (garbage/NaN in the OOB tail of the
    # partial last block must never propagate; a multiplicative mask would).
    row_ids = i * tile_b + lax.broadcasted_iota(jnp.int32, (tb, 1), 0)
    out_ref[...] = jnp.where(row_ids < total_b, per_row, jnp.zeros_like(per_row))


def cross_entropy_label_smooth(inputs, targets, *, num_classes: int,
                               epsilon: float = 0.1, tile_b: int | None = None):
    """inputs: (B, num_classes) logits (any float dtype, NOT upcast here);
    targets: (B,) int labels. Returns scalar f32 loss."""
    b, k = inputs.shape
    assert k == num_classes
    in_bytes = jnp.dtype(inputs.dtype).itemsize

    try:
        vmem_cap = int(pltpu.get_tpu_info().vmem_capacity_bytes)
    except Exception:
        vmem_cap = 64 << 20   # conservative (v7x per-core physical)

    if tile_b is None:
        # Footprint per pipelined step: double-buffered native-dtype input tile plus
        # ~6 (TB, K) f32/i32 temporaries (f32 cast, shifted, exp, iota, select, staging).
        budget = min(vmem_cap // 3, 24 << 20)            # v7x-safe (64 MiB/TC physical)
        per_row_bytes = k * (2 * in_bytes + 6 * 4)
        tb = (budget // per_row_bytes) // 8 * 8
        tb = min(tb, 2048)
        if tb < 8:
            # TODO(synk): flash-style K-tiling (inner "arbitrary" K axis with online
            #             max/LSE) is required before vocab-scale K; fail loudly here.
            raise ValueError(
                f"num_classes={k} too large for a full-K row tile within the VMEM "
                f"budget ({budget} bytes); K-tiling not implemented.")
    else:
        tb = max(8, _round_up(int(tile_b), 8))
    # Do not tile past the batch; keep the single/last block no larger than needed.
    tb = min(tb, max(8, (b // 8) * 8))

    num_tiles = pl.cdiv(b, tb)
    tgt2d = targets.astype(jnp.int32).reshape(b, 1)

    kernel = functools.partial(
        _label_smooth_ce_kernel,
        epsilon=float(epsilon), num_classes=int(num_classes),
        total_b=int(b), tile_b=int(tb))

    per_row = pl.pallas_call(
        kernel,
        out_shape=jax.ShapeDtypeStruct((b, 1), jnp.float32),
        grid_spec=pltpu.PrefetchScalarGridSpec(
            num_scalar_prefetch=0,
            grid=(num_tiles,),
            in_specs=[
                pl.BlockSpec((tb, k), lambda i: (i, 0)),   # logits (native dtype)
                pl.BlockSpec((tb, 1), lambda i: (i, 0)),   # int32 labels
            ],
            out_specs=pl.BlockSpec((tb, 1), lambda i: (i, 0)),
        ),
        compiler_params=pltpu.CompilerParams(
            dimension_semantics=("parallel",),             # shardable across v7x cores
            vmem_limit_bytes=int(min(3 * vmem_cap // 4, 96 << 20))),
    )(inputs, tgt2d)

    # Tiny deterministic final reduction (B f32 values) outside the kernel.
    return jnp.sum(per_row) / jnp.float32(b)


def _reference(inputs, targets, num_classes, epsilon=0.1):
    log_probs = jax.nn.log_softmax(inputs.astype(jnp.float32), axis=1)
    onehot = jax.nn.one_hot(targets, num_classes, dtype=jnp.float32)
    smoothed = (1.0 - epsilon) * onehot + epsilon / num_classes
    return (-smoothed * log_probs).mean(0).sum()


if __name__ == "__main__":
    key = jax.random.PRNGKey(0)
    batch, num_classes = 20, 128          # lane-dense K; ragged batch vs. tile of 8
    k1, k2 = jax.random.split(key)
    logits = jax.random.normal(k1, (batch, num_classes), dtype=jnp.float32)
    labels = jax.random.randint(k2, (batch,), 0, num_classes, dtype=jnp.int32)

    # Multi-tile path with an unpadded ragged tail: 20 rows, TB=8 -> 3 grid steps,
    # last block partial and masked in-kernel.
    loss = cross_entropy_label_smooth(logits, labels, num_classes=num_classes,
                                      epsilon=0.1, tile_b=8)
    loss = jax.block_until_ready(loss)
    ref = _reference(logits, labels, num_classes, epsilon=0.1)
    assert jnp.allclose(loss, ref, rtol=1e-5, atol=1e-5), (loss, ref)

    # Default tiling + bf16 ingress (no wrapper upcast; MXU-offloaded reductions).
    logits_bf16 = logits.astype(jnp.bfloat16)
    loss_bf16 = cross_entropy_label_smooth(logits_bf16, labels,
                                           num_classes=num_classes, epsilon=0.1)
    loss_bf16 = jax.block_until_ready(loss_bf16)
    ref_bf16 = _reference(logits_bf16, labels, num_classes, epsilon=0.1)
    assert jnp.allclose(loss_bf16, ref_bf16, rtol=2e-2, atol=2e-2), (loss_bf16, ref_bf16)

    print("KERNEL_OK")
</pallas_src>

<mosaic_0001>
module attributes {stable_mosaic.version = 11 : i64} {
  func.func @_label_smooth_ce_kernel(%arg0: i32, %arg1: memref<8x128xf32, #tpu.memory_space<vmem>>, %arg2: memref<8x1xi32, #tpu.memory_space<vmem>>, %arg3: memref<8x1xf32, #tpu.memory_space<vmem>>) attributes {dimension_semantics = [#tpu.dimension_semantics<parallel>], iteration_bounds = array<i64: 3>, scalar_prefetch = 0 : i64, scratch_operands = 0 : i64, tpu.core_type = #tpu.core_type<tc>, window_params = [{transform_indices = @transform_0, window_bounds = array<i64: 8, 128>}, {transform_indices = @transform_1, window_bounds = array<i64: 8, 1>}, {transform_indices = @transform_2, window_bounds = array<i64: 8, 1>}]} {
    %c0 = arith.constant 0 : index
    %c0_0 = arith.constant 0 : index
    %0 = vector.load %arg1[%c0, %c0_0] : memref<8x128xf32, #tpu.memory_space<vmem>>, vector<8x128xf32>
    %cst = arith.constant dense<0xFF800000> : vector<8xf32>
    %1 = vector.multi_reduction <maximumf>, %0, %cst [1] : vector<8x128xf32> to vector<8xf32>
    %2 = vector.shape_cast %1 : vector<8xf32> to vector<8x1xf32>
    %3 = tpu.iota {dimensions = array<i32: 1>} : vector<8x128xi32>
    %c0_1 = arith.constant 0 : index
    %c0_2 = arith.constant 0 : index
    %4 = vector.load %arg2[%c0_1, %c0_2] : memref<8x1xi32, #tpu.memory_space<vmem>>, vector<8x1xi32>
    %5 = vector.broadcast %4 : vector<8x1xi32> to vector<8x128xi32>
    %6 = arith.cmpi eq, %3, %5 : vector<8x128xi32>
    %cst_3 = arith.constant 0.000000e+00 : f32
    %7 = vector.broadcast %cst_3 : f32 to vector<8x128xf32>
    %8 = arith.select %6, %0, %7 : vector<8x128xi1>, vector<8x128xf32>
    %cst_4 = arith.constant dense<0.000000e+00> : vector<8xf32>
    %9 = vector.multi_reduction <add>, %8, %cst_4 [1] : vector<8x128xf32> to vector<8xf32>
    %10 = vector.shape_cast %9 : vector<8xf32> to vector<8x1xf32>
    %11 = vector.broadcast %2 : vector<8x1xf32> to vector<8x128xf32>
    %12 = arith.subf %0, %11 : vector<8x128xf32>
    %13 = math.exp %12 : vector<8x128xf32>
    %cst_5 = arith.constant dense<0.000000e+00> : vector<8xf32>
    %14 = vector.multi_reduction <add>, %13, %cst_5 [1] : vector<8x128xf32> to vector<8xf32>
    %15 = vector.shape_cast %14 : vector<8xf32> to vector<8x1xf32>
    %cst_6 = arith.constant dense<0.000000e+00> : vector<8xf32>
    %16 = vector.multi_reduction <add>, %12, %cst_6 [1] : vector<8x128xf32> to vector<8xf32>
    %17 = vector.shape_cast %16 : vector<8xf32> to vector<8x1xf32>
    %18 = math.log %15 : vector<8x1xf32>
    %19 = arith.subf %10, %2 : vector<8x1xf32>
    %20 = arith.subf %19, %18 : vector<8x1xf32>
    %cst_7 = arith.constant 0.899999976 : f32
    %21 = vector.broadcast %cst_7 : f32 to vector<8x1xf32>
    %22 = arith.mulf %21, %20 : vector<8x1xf32>
    %cst_8 = arith.constant 1.280000e+02 : f32
    %23 = vector.broadcast %cst_8 : f32 to vector<8x1xf32>
    %24 = arith.mulf %23, %18 : vector<8x1xf32>
    %25 = arith.subf %17, %24 : vector<8x1xf32>
    %cst_9 = arith.constant 7.812500e-04 : f32
    %26 = vector.broadcast %cst_9 : f32 to vector<8x1xf32>
    %27 = arith.mulf %26, %25 : vector<8x1xf32>
    %28 = arith.addf %22, %27 : vector<8x1xf32>
    %cst_10 = arith.constant 0.000000e+00 : f32
    %29 = vector.broadcast %cst_10 : f32 to vector<8x1xf32>
    %30 = arith.subf %29, %28 : vector<8x1xf32>
    %c8_i32 = arith.constant 8 : i32
    %31 = arith.muli %arg0, %c8_i32 : i32
    %32 = tpu.iota {dimensions = array<i32: 0>} : vector<8x1xi32>
    %33 = vector.broadcast %31 : i32 to vector<8x1xi32>
    %34 = arith.addi %33, %32 : vector<8x1xi32>
    %c20_i32 = arith.constant 20 : i32
    %35 = vector.broadcast %c20_i32 : i32 to vector<8x1xi32>
    %36 = arith.cmpi slt, %34, %35 : vector<8x1xi32>
    %cst_11 = arith.constant 0.000000e+00 : f32
    %37 = vector.broadcast %cst_11 : f32 to vector<8x1xf32>
    %38 = arith.select %36, %30, %37 : vector<8x1xi1>, vector<8x1xf32>
    %c0_12 = arith.constant 0 : index
    %c0_13 = arith.constant 0 : index
    %39 = vector.load %arg3[%c0_12, %c0_13] : memref<8x1xf32, #tpu.memory_space<vmem>>, vector<8x1xf32>
    tpu.vector_store %arg3[%c0_12, %c0_13], %38 {strides = array<i32>} : memref<8x1xf32, #tpu.memory_space<vmem>>, vector<8x1xf32>,
    return
  }
  func.func @transform_0(%arg0: i32) -> (i32, i32) {
    %c0_i32 = arith.constant 0 : i32
    %c0_i32_0 = arith.constant 0 : i32
    return %arg0, %c0_i32 : i32, i32
  }
  func.func @transform_1(%arg0: i32) -> (i32, i32) {
    %c0_i32 = arith.constant 0 : i32
    %c0_i32_0 = arith.constant 0 : i32
    return %arg0, %c0_i32 : i32, i32
  }
  func.func @transform_2(%arg0: i32) -> (i32, i32) {
    %c0_i32 = arith.constant 0 : i32
    %c0_i32_0 = arith.constant 0 : i32
    return %arg0, %c0_i32 : i32, i32
  }
}

</mosaic_0001>

<llo_original>
// kernel: tpu_custom_call.1
$region0: #{tpu_custom_call.1}
  #allocation0 [shape = 'u32[]', space=smem, size = 0x4, offset = 0x4, fixed_abs, tag = 'smem constant byte address 0x4 - core index']
  #allocation1 [shape = 'u32[144,128]{1,0:T(1,128)}', space=vmem, size = 0x12000, scoped, tag = 'internal scratch']
  %s0 = inlined_call_operand.vmem [shape: f32[20,128], index: 0, kind: input, shape index: {}]
  %s1 = inlined_call_operand.vmem [shape: s32[20,1], index: 1, kind: input, shape index: {}]
  %s2 = inlined_call_operand.vmem [shape: f32[20,1], index: 2, kind: output, shape index: {}]
  %s3 = sld [smem:[#allocation0]]
  $region41: #{tpu_custom_call.1} parent=0
    _
  %s5 = ssub.s32 1, %s3
  %s6 = scalar_select 0, %s5, %s3
  loop: start=0, step=1, limit=5
  $region2: #{tpu_custom_call.1} parent=0 // loop_pre_header
    _
  $region3: #{tpu_custom_call.1} parent=0 // loop_header
    %s8 = sphi 0, %s12
    %p9 = scmp.ge.s32.totalorder %s8, 5
    %s18 = sphi 0, %s20
    %s21 = sphi 0, %s18
    %s22 = sphi 0, %s21
    %s38 = sphi 0, %s22
    %s44 = sphi 0, %s46
    %s47 = sphi 0, %s44
    %s48 = sphi 0, %s47
    %s64 = sphi 0, %s48
    %s70 = sphi 0, %s72
    %s73 = sphi 0, %s70
    %s74 = sphi 0, %s73
    %s90 = sphi 0, %s74
  $region4: #{tpu_custom_call.1} parent=0 // loop_header_branch
    %11 = sbr.rel (%p9) target = $region8
  $region5: #{tpu_custom_call.1} parent=0 // loop_body
    %s13 = ssub.s32 %s8, 1
    %s14 = ssub.s32 %s8, 2
    %s15 = sadd.s32 %s8, 1
    %s16 = ssub.s32 %s8, %s15
    %p17 = scmp.eq.s32.totalorder %s16, 0
    %s19 = sadd.s32 %s18, 1
    %s20 = scalar_select %p17, %s18, %s19
    %p23 = pneg %p17
    %p24 = scmp.eq.s32.totalorder %s8, 2
    %p25 = por %p23, %p24
    %p26 = scmp.ne.s32.totalorder %s18, %s21
    %p27 = scmp.eq.s32.totalorder %s8, 0
    %p28 = por %p26, %p27
    %p29 = scmp.ne.s32.totalorder %s18, %s21
    %p30 = scmp.eq.s32.totalorder %s13, 2
    %p31 = por %p29, %p30
    %p32 = scmp.ne.s32.totalorder %s21, %s22
    %p33 = scmp.eq.s32.totalorder %s13, 0
    %p34 = por %p32, %p33
    %p35 = scmp.ne.s32.totalorder %s21, %s22
    %p36 = scmp.eq.s32.totalorder %s14, 2
    %p37 = por %p35, %p36
    %p39 = scmp.ne.s32.totalorder %s22, %s38
    %p40 = scmp.eq.s32.totalorder %s14, 0
    %p41 = por %p39, %p40
    %s42 = ssub.s32 %s8, %s15
    %p43 = scmp.eq.s32.totalorder %s42, 0
    %s45 = sadd.s32 %s44, 1
    %s46 = scalar_select %p43, %s44, %s45
    %p49 = pneg %p43
    %p50 = scmp.eq.s32.totalorder %s8, 2
    %p51 = por %p49, %p50
    %p52 = scmp.ne.s32.totalorder %s44, %s47
    %p53 = scmp.eq.s32.totalorder %s8, 0
    %p54 = por %p52, %p53
    %p55 = scmp.ne.s32.totalorder %s44, %s47
    %p56 = scmp.eq.s32.totalorder %s13, 2
    %p57 = por %p55, %p56
    %p58 = scmp.ne.s32.totalorder %s47, %s48
    %p59 = scmp.eq.s32.totalorder %s13, 0
    %p60 = por %p58, %p59
    %p61 = scmp.ne.s32.totalorder %s47, %s48
    %p62 = scmp.eq.s32.totalorder %s14, 2
    %p63 = por %p61, %p62
    %p65 = scmp.ne.s32.totalorder %s48, %s64
    %p66 = scmp.eq.s32.totalorder %s14, 0
    %p67 = por %p65, %p66
    %s68 = ssub.s32 %s8, %s15
    %p69 = scmp.eq.s32.totalorder %s68, 0
    %s71 = sadd.s32 %s70, 1
    %s72 = scalar_select %p69, %s70, %s71
    %p75 = pneg %p69
    %p76 = scmp.eq.s32.totalorder %s8, 2
    %p77 = por %p75, %p76
    %p78 = scmp.ne.s32.totalorder %s70, %s73
    %p79 = scmp.eq.s32.totalorder %s8, 0
    %p80 = por %p78, %p79
    %p81 = scmp.ne.s32.totalorder %s70, %s73
    %p82 = scmp.eq.s32.totalorder %s13, 2
    %p83 = por %p81, %p82
    %p84 = scmp.ne.s32.totalorder %s73, %s74
    %p85 = scmp.eq.s32.totalorder %s13, 0
    %p86 = por %p84, %p85
    %p87 = scmp.ne.s32.totalorder %s73, %s74
    %p88 = scmp.eq.s32.totalorder %s14, 2
    %p89 = por %p87, %p88
    %p91 = scmp.ne.s32.totalorder %s74, %s90
    %p92 = scmp.eq.s32.totalorder %s14, 0
    %p93 = por %p91, %p92
    %p94 = scmp.le.s32.totalorder 1, %s8
    %p95 = scmp.lt.s32.totalorder %s8, 4
    %p96 = pnand %p94, %p95
    %p97 = pneg %p96
    // Predicated region
    $region9: #{tpu_custom_call.1} parent=5 // pred_check
      _
    $region10: #{tpu_custom_call.1} parent=5 // pred_check_branch
      %99 = sbr.rel (%p96) target = $region12
    $region11: #{tpu_custom_call.1} parent=5 // pred_region
      %s100 = ssub.s32 %s8, 1
    $region12: #{tpu_custom_call.1} parent=5 // pred_fallthru
      _
    %p101 = scmp.lt.s32.totalorder %s8, 3
    // Predicated region
    $region13: #{tpu_custom_call.1} parent=5 // pred_check
      %p102 = pneg %p101
    $region14: #{tpu_custom_call.1} parent=5 // pred_check_branch
      %104 = sbr.rel (%p102) target = $region16
    $region15: #{tpu_custom_call.1} parent=5 // pred_region
      // Predicated region
      $region17: #{tpu_custom_call.1} parent=15 // pred_check
        %p105 = pneg %p28
      $region18: #{tpu_custom_call.1} parent=15 // pred_check_branch
        %107 = sbr.rel (%p105) target = $region20
      $region19: #{tpu_custom_call.1} parent=15 // pred_region
        %p108 = scmp.lt.s32.totalorder %s8, 2
        %s109 = scalar_select %p108, %s8, 2
        %s110 = smul.addr %s109, 8
        %s111 = scalar_lea.vmem %s0, %s110
      $region20: #{tpu_custom_call.1} parent=15 // pred_fallthru
        _
      // Predicated region
      $region21: #{tpu_custom_call.1} parent=15 // pred_check
        %p112 = pneg %p54
      $region22: #{tpu_custom_call.1} parent=15 // pred_check_branch
        %114 = sbr.rel (%p112) target = $region24
      $region23: #{tpu_custom_call.1} parent=15 // pred_region
        %p115 = scmp.lt.s32.totalorder %s8, 2
        %s116 = scalar_select %p115, %s8, 2
        %s117 = smul.addr %s116, 8
        %s118 = scalar_lea.vmem %s1, %s117
      $region24: #{tpu_custom_call.1} parent=15 // pred_fallthru
        _
    $region16: #{tpu_custom_call.1} parent=5 // pred_fallthru
      _
    %p119 = scmp.le.s32.totalorder 1, %s8
    %p120 = scmp.lt.s32.totalorder %s8, 4
    %p121 = pnand %p119, %p120
    %p122 = pneg %p121
    // Predicated region
    $region25: #{tpu_custom_call.1} parent=5 // pred_check
      _
    $region26: #{tpu_custom_call.1} parent=5 // pred_check_branch
      %124 = sbr.rel (%p121) target = $region28
    $region27: #{tpu_custom_call.1} parent=5 // pred_region
      %s125 = ssub.s32 %s8, 1
      %p126 = scmp.lt.s32.totalorder %s13, 2
      %s127 = scalar_select %p126, %s13, 2
      %s128 = smul.addr %s127, 8
      %s129 = scalar_lea.vmem %s0, %s128
      %p130 = pneg %p34
      %p131 = pneg %p31
      %p132 = scmp.lt.s32.totalorder %s13, 2
      %s133 = scalar_select %p132, %s13, 2
      %s134 = smul.addr %s133, 8
      %s135 = scalar_lea.vmem %s1, %s134
      %p136 = pneg %p60
      %p137 = pneg %p57
      %p138 = pneg %p86
      %p139 = pneg %p83
      %p140 = scmp.lt.s32.totalorder %s13, 2
      %s141 = scalar_select %p140, %s13, 2
      %s142 = smul.addr %s141, 8
      %s143 = scalar_lea.vmem %s2, %s142
      %p144 = scmp.lt.s32.totalorder %s13, 2
      %s145 = scalar_select %p144, %s13, 2
      %s146 = smul.addr %s145, 8
      %s147 = scalar_lea.vmem %s0, %s146
      %p148 = scmp.lt.s32.totalorder %s13, 2
      %s149 = scalar_select %p148, %s13, 2
      %s150 = smul.addr %s149, 8
      %s151 = scalar_lea.vmem %s1, %s150
      %p152 = scmp.lt.s32.totalorder %s13, 2
      %s153 = scalar_select %p152, %s13, 2
      %s154 = smul.addr %s153, 8
      %s155 = scalar_lea.vmem %s2, %s154
      %v156 = vld [vmem:[%s147] sm:$0xff]
      %157 = vmax.xlane.f32.xlu0 %v156
      %v158 = vpop.xlane.xlu0 %157
      %v159 = vlaneseq
      %v160 = vand.u32 %v159, 127
      %v161 = vld [vmem:[%s151] sm:$0xff]
      %162 = vset.pattern.permute.xlu0 0
      %163 = vperm.xlu0 %162, %v161
      %v164 = vpop.permute.xlu0 %163
      %vm165 = vcmp.eq.s32.totalorder %v160, %v164
      %v166 = vsel %vm165, %v156, 0.0
      %167 = vadd.xlane.f32.xlu0 %v166
      %v168 = vpop.xlane.xlu0 %167
      %v169 = vsub.f32 %v156, %v158
      %v170 = vmul.f32 %v169, 1.442695
      %v171 = vpow.pop %v170
      %172 = vadd.xlane.f32.xlu0 %v171
      %v173 = vpop.xlane.xlu0 %172
      %174 = vadd.xlane.f32.xlu0 %v169
      %v175 = vpop.xlane.xlu0 %174
      %v176 = vlog2.pop %v173
      %v177 = vmul.f32 %v176, 0.6931472
      %v178 = vsub.f32 %v168, %v158
      %v179 = vsub.f32 %v178, %v177
      %v180 = vmul.f32 %v179, 0.9
      %v181 = vmul.f32 %v177, 128.0
      %v182 = vsub.f32 %v175, %v181
      %v183 = vmul.f32 %v182, 0.00078125
      %v184 = vadd.f32 %v180, %v183
      %v185 = vsub.f32 0.0, %v184
      %s186 = smul.u32 %s13, 8
      %v187 = vlaneseq
      %v188 = vshrl.u32 %v187, 7
      %v189 = vstv %s186
      %v190 = vadd.s32 %v189, %v188
      %vm191 = vcmp.lt.s32.totalorder %v190, 20
      %v192 = vsel %vm191, %v185, 0.0
      %vm193 = vcmask 7168
      %194 = vst.msk [vmem:[%s155] sm:$0xff] %vm193, %v192
      %p195 = scmp.lt.s32.totalorder %s13, 2
      %s196 = scalar_select %p195, %s13, 2
      %s197 = smul.addr %s196, 8
      %s198 = scalar_lea.vmem %s2, %s197
      // Predicated region
      $region29: #{tpu_custom_call.1} parent=27 // pred_check
        %p199 = pneg %p83
      $region30: #{tpu_custom_call.1} parent=27 // pred_check_branch
        %201 = sbr.rel (%p199) target = $region32
      $region31: #{tpu_custom_call.1} parent=27 // pred_region
        _
      $region32: #{tpu_custom_call.1} parent=27 // pred_fallthru
        _
    $region28: #{tpu_custom_call.1} parent=5 // pred_fallthru
      _
    %p202 = scmp.le.s32.totalorder 2, %s8
    // Predicated region
    $region33: #{tpu_custom_call.1} parent=5 // pred_check
      %p203 = pneg %p202
    $region34: #{tpu_custom_call.1} parent=5 // pred_check_branch
      %205 = sbr.rel (%p203) target = $region36
    $region35: #{tpu_custom_call.1} parent=5 // pred_region
      %s206 = ssub.s32 %s8, 2
      // Predicated region
      $region37: #{tpu_custom_call.1} parent=35 // pred_check
        %p207 = pneg %p89
      $region38: #{tpu_custom_call.1} parent=35 // pred_check_branch
        %209 = sbr.rel (%p207) target = $region40
      $region39: #{tpu_custom_call.1} parent=35 // pred_region
        %p210 = scmp.lt.s32.totalorder %s14, 2
        %s211 = scalar_select %p210, %s14, 2
        %s212 = smul.addr %s211, 8
        %s213 = scalar_lea.vmem %s2, %s212
      $region40: #{tpu_custom_call.1} parent=35 // pred_fallthru
        _
    $region36: #{tpu_custom_call.1} parent=5 // pred_fallthru
      _
  $region6: #{tpu_custom_call.1} parent=0 // loop_footer
    %s12 = sadd.s32 1, %s8
  $region7: #{tpu_custom_call.1} parent=0 // loop_footer_branch
    %7 = sbr.rel target = $region3
  $region8: #{tpu_custom_call.1} parent=0 // loop_exit
    _

</llo_original>
